<compile_context>
chip_gen: v6e
topology: v6e:2x2x1
jax: 0.10.0
libtpu: 0.0.40
codegen_flags: <defaults>
</compile_context>

<pallas_src>
import functools

import jax
import jax.numpy as jnp
from jax.experimental import pallas as pl
from jax.experimental.pallas import tpu as pltpu

_LANE_GROUP = 1024                # 8 * 128: padding granularity on the node axis
_DEFAULT_MAX_TILE = 128 * 1024    # ~3 MB of payload per grid step (f32, D=3)


def _round_up(x, m):
    return ((x + m - 1) // m) * m


def _choose_tile(n, max_tile):
    """Pick the node-tile (lane count) and the padded node count."""
    n_ceil = _round_up(n, _LANE_GROUP)
    if n_ceil <= max_tile:
        # Whole array fits in one tile.  When there is enough work, split into
        # two grid steps so dimension_semantics=("parallel",) can shard across
        # v7x's two TensorCores (harmless single-core loop on v5e/v6e).
        tile = n_ceil // 2 if n_ceil >= 2 * _LANE_GROUP else n_ceil
    else:
        tile = max_tile
    n_pad = _round_up(n, tile)
    return tile, n_pad


def _coors_norm_kernel(x_ref, scale_ref, out_ref, *, eps):
    # x_ref:    [D, TILE_N] VMEM  (D = 3 on sublanes, nodes lane-dense)
    # scale_ref:[1] f32 SMEM      (read once as a scalar)
    # out_ref:  [D, TILE_N] VMEM  (lane-dense, unmasked stores)
    x = x_ref[...]
    ss = jnp.sum(x * x, axis=0, keepdims=True)      # [1, TILE_N] sum of squares (XLU)
    denom = jnp.maximum(jnp.sqrt(ss), eps)          # norm.clamp(min=eps)
    # Same FP order as torch: (coors / clamped_norm) * scale.
    out_ref[...] = ((x / denom) * scale_ref[0]).astype(out_ref.dtype)


@functools.partial(jax.jit, static_argnames=("eps", "max_tile"))
def coors_norm_cf(coors_t, scale, *, eps=1e-8, max_tile=_DEFAULT_MAX_TILE):
    """CoorsNorm on channels-first coordinates.

    coors_t: [D, N] (D = coordinate dim, typically 3; nodes on the fast axis)
    scale:   [1]
    Returns [D, N].  This is the zero-layout-overhead entry point.
    """
    d, n = coors_t.shape
    max_tile = max(_LANE_GROUP, _round_up(max_tile, _LANE_GROUP))
    tile, n_pad = _choose_tile(n, max_tile)

    x_t = coors_t
    if n_pad != n:
        # Zero padding is safe: norm 0 -> clamped to eps -> output stays 0.
        # (Pad amount is < one tile; XLA fuses this into the producer copy.)
        x_t = jnp.pad(x_t, ((0, 0), (0, n_pad - n)))

    itemsize = jnp.dtype(coors_t.dtype).itemsize
    # VMEM cost model: a (d, tile) block is sublane-padded to a full vreg row
    # group, so each buffer costs ~32*tile bytes; double-buffered in + out
    # pairs -> ~128*tile bytes.  Add headroom and never go below 32 MiB (safe
    # on every generation: v5e/v6e 128 MiB physical, v7x 64 MiB physical).
    vmem_bytes = max(32 << 20, 128 * tile + (4 << 20))

    out_t = pl.pallas_call(
        functools.partial(_coors_norm_kernel, eps=eps),
        out_shape=jax.ShapeDtypeStruct((d, n_pad), coors_t.dtype),
        grid=(n_pad // tile,),
        in_specs=[
            pl.BlockSpec((d, tile), lambda i: (0, i)),
            pl.BlockSpec(memory_space=pltpu.MemorySpace.SMEM),
        ],
        out_specs=pl.BlockSpec((d, tile), lambda i: (0, i)),
        compiler_params=pltpu.CompilerParams(
            dimension_semantics=("parallel",),
            vmem_limit_bytes=int(vmem_bytes),
        ),
        cost_estimate=pl.CostEstimate(
            flops=9 * n,                          # 3 mul + 2 add + clamp + 3 div
            transcendentals=n,                    # one sqrt per node
            bytes_accessed=2 * n * d * itemsize,  # read + write
        ),
    )(x_t, scale.astype(jnp.float32))

    if n_pad != n:
        out_t = out_t[:, :n]
    return out_t


@functools.partial(jax.jit, static_argnames=("eps", "max_tile"))
def coors_norm(coors, scale, *, eps=1e-8, max_tile=_DEFAULT_MAX_TILE):
    """coors: [N, D] float, scale: [1] float -> [N, D] float.

    Thin wrapper around the channels-first kernel.  The two transposes are
    plain copy fusions for XLA; callers that keep coordinates in [D, N] layout
    (e.g. across repeated EGNN layers) should call `coors_norm_cf` directly to
    avoid them.
    """
    out_t = coors_norm_cf(jnp.transpose(coors), scale, eps=eps, max_tile=max_tile)
    return jnp.transpose(out_t)


class CoorsNorm:
    """JAX/Pallas port of the PyTorch CoorsNorm module."""

    def __init__(self, eps=1e-8, scale_init=1.0):
        self.eps = eps
        # nn.Parameter(torch.zeros(1).fill_(scale_init))
        self.scale = jnp.full((1,), scale_init, jnp.float32)

    def __call__(self, coors):
        shape = coors.shape
        flat = coors.reshape(-1, shape[-1])        # support arbitrary leading dims
        out = coors_norm(flat, self.scale, eps=self.eps)
        return out.reshape(shape)


if __name__ == "__main__":
    key = jax.random.PRNGKey(0)
    N, D = 256, 3
    coors = jax.random.normal(key, (N, D), jnp.float32)

    module = CoorsNorm(eps=1e-8, scale_init=0.5)
    out = module(coors)
    jax.block_until_ready(out)

    # Pure-JAX reference of the PyTorch forward.
    norm = jnp.linalg.norm(coors, axis=-1, keepdims=True)
    ref = coors / jnp.maximum(norm, module.eps) * module.scale

    assert out.shape == coors.shape
    err = float(jnp.max(jnp.abs(out - ref)))
    assert jnp.allclose(out, ref, atol=1e-6, rtol=1e-6), err

    # Also exercise the channels-first (no-transpose) fast path.
    out_cf = coors_norm_cf(jnp.transpose(coors), module.scale, eps=module.eps)
    jax.block_until_ready(out_cf)
    assert jnp.allclose(jnp.transpose(out_cf), ref, atol=1e-6, rtol=1e-6)

    print("KERNEL_OK")
</pallas_src>

<mosaic_0001>
module attributes {stable_mosaic.version = 11 : i64} {
  func.func @_coors_norm_kernel(%arg0: i32, %arg1: memref<3x1024xf32, #tpu.memory_space<vmem>>, %arg2: memref<1xf32, #tpu.memory_space<smem>>, %arg3: memref<3x1024xf32, #tpu.memory_space<vmem>>) attributes {dimension_semantics = [#tpu.dimension_semantics<parallel>], iteration_bounds = array<i64: 1>, scalar_prefetch = 0 : i64, scratch_operands = 0 : i64, tpu.core_type = #tpu.core_type<tc>, window_params = [{transform_indices = @transform_0, window_bounds = array<i64: 3, 1024>}, {transform_indices = @transform_1, window_bounds = array<i64: 1>}, {transform_indices = @transform_2, window_bounds = array<i64: 3, 1024>}]} {
    %c0 = arith.constant 0 : index
    %c0_0 = arith.constant 0 : index
    %0 = vector.load %arg1[%c0, %c0_0] : memref<3x1024xf32, #tpu.memory_space<vmem>>, vector<3x1024xf32>
    %1 = arith.mulf %0, %0 : vector<3x1024xf32>
    %cst = arith.constant dense<0.000000e+00> : vector<1024xf32>
    %2 = vector.multi_reduction <add>, %1, %cst [0] : vector<3x1024xf32> to vector<1024xf32>
    %3 = vector.shape_cast %2 : vector<1024xf32> to vector<1x1024xf32>
    %4 = math.sqrt %3 : vector<1x1024xf32>
    %cst_1 = arith.constant 9.99999993E-9 : f32
    %5 = vector.broadcast %cst_1 : f32 to vector<1x1024xf32>
    %6 = arith.maximumf %4, %5 : vector<1x1024xf32>
    %7 = vector.broadcast %6 : vector<1x1024xf32> to vector<3x1024xf32>
    %8 = arith.divf %0, %7 : vector<3x1024xf32>
    %c0_2 = arith.constant 0 : index
    %9 = memref.load %arg2[%c0_2] : memref<1xf32, #tpu.memory_space<smem>>
    %10 = vector.broadcast %9 : f32 to vector<3x1024xf32>
    %11 = arith.mulf %8, %10 : vector<3x1024xf32>
    %c0_3 = arith.constant 0 : index
    %c0_4 = arith.constant 0 : index
    %12 = vector.load %arg3[%c0_3, %c0_4] : memref<3x1024xf32, #tpu.memory_space<vmem>>, vector<3x1024xf32>
    tpu.vector_store %arg3[%c0_3, %c0_4], %11 {strides = array<i32>} : memref<3x1024xf32, #tpu.memory_space<vmem>>, vector<3x1024xf32>,
    return
  }
  func.func @transform_0(%arg0: i32) -> (i32, i32) {
    %c0_i32 = arith.constant 0 : i32
    %c0_i32_0 = arith.constant 0 : i32
    return %c0_i32, %arg0 : i32, i32
  }
  func.func @transform_1(%arg0: i32) -> i32 {
    %c0_i32 = arith.constant 0 : i32
    %c0_i32_0 = arith.constant 0 : i32
    return %c0_i32 : i32
  }
  func.func @transform_2(%arg0: i32) -> (i32, i32) {
    %c0_i32 = arith.constant 0 : i32
    %c0_i32_0 = arith.constant 0 : i32
    return %c0_i32, %arg0 : i32, i32
  }
}

</mosaic_0001>

<llo_original>
// kernel: coors_norm_cf.1
$region0: #{coors_norm_cf.1}
  #allocation0 [shape = 'u32[]', space=smem, size = 0x4, offset = 0x4, fixed_abs, tag = 'smem constant byte address 0x4 - core index']
  #allocation1 [shape = 'u32[144,128]{1,0:T(1,128)}', space=vmem, size = 0x12000, scoped, tag = 'internal scratch']
  #allocation2 [shape = 'f32[1]{0:T(128)S(6)}', space=smem, size = 0x200, scoped, tag = 'scoped memory for coors_norm_cf.1']
  %s0 = inlined_call_operand.vmem [shape: f32[3,1024], index: 0, kind: input, shape index: {}]
  %s1 = inlined_call_operand.<no memory space> [shape: f32[1], index: 1, kind: input, shape index: {}]
  %s2 = inlined_call_operand.vmem [shape: f32[3,1024], index: 2, kind: output, shape index: {}]
  %s3 = sld [smem:[#allocation0]]
  $region18: #{coors_norm_cf.1} parent=0
    _
  %s5 = ssub.s32 1, %s3
  %s6 = scalar_select 0, %s5, %s3
  %7 = sst [smem:[#allocation2]] %s1
  // Predicated region
  $region2: #{coors_norm_cf.1} parent=0 // pred_check
    _
  $region3: #{coors_norm_cf.1} parent=0 // pred_check_branch
    %9 = sbr.rel (0) target = $region5
  $region4: #{coors_norm_cf.1} parent=0 // pred_region
    _
  $region5: #{coors_norm_cf.1} parent=0 // pred_fallthru
    _
  // Predicated region
  $region6: #{coors_norm_cf.1} parent=0 // pred_check
    _
  $region7: #{coors_norm_cf.1} parent=0 // pred_check_branch
    %11 = sbr.rel (0) target = $region9
  $region8: #{coors_norm_cf.1} parent=0 // pred_region
    _
  $region9: #{coors_norm_cf.1} parent=0 // pred_fallthru
    _
  %v12 = vld [vmem:[%s0] sm:$0x77]
  %v13 = vld [vmem:[%s0 + $0x8] sm:$0x77]
  %v14 = vld [vmem:[%s0 + $0x10] sm:$0x77]
  %v15 = vld [vmem:[%s0 + $0x18] sm:$0x77]
  %v16 = vmul.f32 %v12, %v12
  %v17 = vmul.f32 %v13, %v13
  %v18 = vmul.f32 %v14, %v14
  %v19 = vmul.f32 %v15, %v15
  %v24 = vcombine.high %v16, %v16
  %v25 = vcombine.high %v17, %v17
  %v26 = vcombine.high %v18, %v18
  %v27 = vcombine.high %v19, %v19
  %vm32 = vcmask 1042432
  %v33 = vsel %vm32, %v16, 0.0
  %v34 = vrot.slane %v33, 4
  %v35 = vadd.f32 %v33, %v34
  %v36 = vrot.slane %v35, 2
  %v37 = vadd.f32 %v35, %v36
  %v38 = vrot.slane %v37, 1
  %v39 = vadd.f32 %v37, %v38
  %v40 = vsel %vm32, %v24, 0.0
  %v41 = vrot.slane %v40, 4
  %v42 = vadd.f32 %v40, %v41
  %v43 = vrot.slane %v42, 2
  %v44 = vadd.f32 %v42, %v43
  %v45 = vrot.slane %v44, 1
  %v46 = vadd.f32 %v44, %v45
  %v47 = vsel %vm32, %v17, 0.0
  %v48 = vrot.slane %v47, 4
  %v49 = vadd.f32 %v47, %v48
  %v50 = vrot.slane %v49, 2
  %v51 = vadd.f32 %v49, %v50
  %v52 = vrot.slane %v51, 1
  %v53 = vadd.f32 %v51, %v52
  %v54 = vsel %vm32, %v25, 0.0
  %v55 = vrot.slane %v54, 4
  %v56 = vadd.f32 %v54, %v55
  %v57 = vrot.slane %v56, 2
  %v58 = vadd.f32 %v56, %v57
  %v59 = vrot.slane %v58, 1
  %v60 = vadd.f32 %v58, %v59
  %v61 = vsel %vm32, %v18, 0.0
  %v62 = vrot.slane %v61, 4
  %v63 = vadd.f32 %v61, %v62
  %v64 = vrot.slane %v63, 2
  %v65 = vadd.f32 %v63, %v64
  %v66 = vrot.slane %v65, 1
  %v67 = vadd.f32 %v65, %v66
  %v68 = vsel %vm32, %v26, 0.0
  %v69 = vrot.slane %v68, 4
  %v70 = vadd.f32 %v68, %v69
  %v71 = vrot.slane %v70, 2
  %v72 = vadd.f32 %v70, %v71
  %v73 = vrot.slane %v72, 1
  %v74 = vadd.f32 %v72, %v73
  %v75 = vsel %vm32, %v19, 0.0
  %v76 = vrot.slane %v75, 4
  %v77 = vadd.f32 %v75, %v76
  %v78 = vrot.slane %v77, 2
  %v79 = vadd.f32 %v77, %v78
  %v80 = vrot.slane %v79, 1
  %v81 = vadd.f32 %v79, %v80
  %v82 = vsel %vm32, %v27, 0.0
  %v83 = vrot.slane %v82, 4
  %v84 = vadd.f32 %v82, %v83
  %v85 = vrot.slane %v84, 2
  %v86 = vadd.f32 %v84, %v85
  %v87 = vrot.slane %v86, 1
  %v88 = vadd.f32 %v86, %v87
  %v89 = vrsqrt.pop %v39
  %v90 = vmul.f32 %v39, %v89
  %vm91 = vcmp.eq.f32.partialorder %v39, inf
  %v92 = vsel %vm91, %v39, %v90
  %vm93 = vcmp.eq.f32.partialorder %v39, 0.0
  %v94 = vand.u32 %v39, 2147483648
  %v95 = vsel %vm93, %v94, %v92
  %v96 = vrsqrt.pop %v46
  %v97 = vmul.f32 %v46, %v96
  %vm98 = vcmp.eq.f32.partialorder %v46, inf
  %v99 = vsel %vm98, %v46, %v97
  %vm100 = vcmp.eq.f32.partialorder %v46, 0.0
  %v101 = vand.u32 %v46, 2147483648
  %v102 = vsel %vm100, %v101, %v99
  %v103 = vrsqrt.pop %v53
  %v104 = vmul.f32 %v53, %v103
  %vm105 = vcmp.eq.f32.partialorder %v53, inf
  %v106 = vsel %vm105, %v53, %v104
  %vm107 = vcmp.eq.f32.partialorder %v53, 0.0
  %v108 = vand.u32 %v53, 2147483648
  %v109 = vsel %vm107, %v108, %v106
  %v110 = vrsqrt.pop %v60
  %v111 = vmul.f32 %v60, %v110
  %vm112 = vcmp.eq.f32.partialorder %v60, inf
  %v113 = vsel %vm112, %v60, %v111
  %vm114 = vcmp.eq.f32.partialorder %v60, 0.0
  %v115 = vand.u32 %v60, 2147483648
  %v116 = vsel %vm114, %v115, %v113
  %v117 = vrsqrt.pop %v67
  %v118 = vmul.f32 %v67, %v117
  %vm119 = vcmp.eq.f32.partialorder %v67, inf
  %v120 = vsel %vm119, %v67, %v118
  %vm121 = vcmp.eq.f32.partialorder %v67, 0.0
  %v122 = vand.u32 %v67, 2147483648
  %v123 = vsel %vm121, %v122, %v120
  %v124 = vrsqrt.pop %v74
  %v125 = vmul.f32 %v74, %v124
  %vm126 = vcmp.eq.f32.partialorder %v74, inf
  %v127 = vsel %vm126, %v74, %v125
  %vm128 = vcmp.eq.f32.partialorder %v74, 0.0
  %v129 = vand.u32 %v74, 2147483648
  %v130 = vsel %vm128, %v129, %v127
  %v131 = vrsqrt.pop %v81
  %v132 = vmul.f32 %v81, %v131
  %vm133 = vcmp.eq.f32.partialorder %v81, inf
  %v134 = vsel %vm133, %v81, %v132
  %vm135 = vcmp.eq.f32.partialorder %v81, 0.0
  %v136 = vand.u32 %v81, 2147483648
  %v137 = vsel %vm135, %v136, %v134
  %v138 = vrsqrt.pop %v88
  %v139 = vmul.f32 %v88, %v138
  %vm140 = vcmp.eq.f32.partialorder %v88, inf
  %v141 = vsel %vm140, %v88, %v139
  %vm142 = vcmp.eq.f32.partialorder %v88, 0.0
  %v143 = vand.u32 %v88, 2147483648
  %v144 = vsel %vm142, %v143, %v141
  %v145 = vmax.f32 %v95, 1e-08
  %v146 = vmax.f32 %v102, 1e-08
  %v147 = vmax.f32 %v109, 1e-08
  %v148 = vmax.f32 %v116, 1e-08
  %v149 = vmax.f32 %v123, 1e-08
  %v150 = vmax.f32 %v130, 1e-08
  %v151 = vmax.f32 %v137, 1e-08
  %v152 = vmax.f32 %v144, 1e-08
  %v161 = vcombine.low %v145, %v146
  %v162 = vcombine.low %v147, %v148
  %v163 = vcombine.low %v149, %v150
  %v164 = vcombine.low %v151, %v152
  %v169 = vrcp.pop %v161
  %v170 = vmul.f32 %v12, %v169
  %v171 = vrcp.pop %v162
  %v172 = vmul.f32 %v13, %v171
  %v173 = vrcp.pop %v163
  %v174 = vmul.f32 %v14, %v173
  %v175 = vrcp.pop %v164
  %v176 = vmul.f32 %v15, %v175
  %s177 = sld [smem:[#allocation2]]
  %v178 = vstv %s177
  %v179 = vmul.f32 %v170, %v178
  %v180 = vmul.f32 %v172, %v178
  %v181 = vmul.f32 %v174, %v178
  %v182 = vmul.f32 %v176, %v178
  %183 = vst [vmem:[%s2] sm:$0x77] %v179
  %184 = vst [vmem:[%s2 + $0x8] sm:$0x77] %v180
  %185 = vst [vmem:[%s2 + $0x10] sm:$0x77] %v181
  %186 = vst [vmem:[%s2 + $0x18] sm:$0x77] %v182
  // Predicated region
  $region10: #{coors_norm_cf.1} parent=0 // pred_check
    _
  $region11: #{coors_norm_cf.1} parent=0 // pred_check_branch
    %188 = sbr.rel (0) target = $region13
  $region12: #{coors_norm_cf.1} parent=0 // pred_region
    _
  $region13: #{coors_norm_cf.1} parent=0 // pred_fallthru
    _
  // Predicated region
  $region14: #{coors_norm_cf.1} parent=0 // pred_check
    _
  $region15: #{coors_norm_cf.1} parent=0 // pred_check_branch
    %190 = sbr.rel (0) target = $region17
  $region16: #{coors_norm_cf.1} parent=0 // pred_region
    _
  $region17: #{coors_norm_cf.1} parent=0 // pred_fallthru
    _

</llo_original>
